<compile_context>
chip_gen: v5e
topology: v5e:2x2
jax: 0.10.0
libtpu: 0.0.40
codegen_flags: <defaults>
</compile_context>

<pallas_src>
import jax
import jax.numpy as jnp
from jax.experimental import pallas as pl
from jax.experimental.pallas import tpu as pltpu


def _fused_kernel(z_ref, t_ref, o_ref):
    # One MXU matmul: (tm, K+1) bf16 @ (K+1, N) bf16 -> f32; bias is already
    # folded into the last contraction row of T.
    o_ref[...] = jnp.dot(
        z_ref[...], t_ref[...], preferred_element_type=jnp.float32
    ).astype(o_ref.dtype)


def _full_spec(shape):
    # Whole-array block (block_shape == array shape -> full-dim exception to the
    # (8, 128) divisibility rule).
    return pl.BlockSpec(shape, lambda *_: (0,) * len(shape))


def hyper_forward_flat(z_aug, t_aug, *, tm=1024, out_dtype=jnp.float32):
    """z_aug: (B, K+1) with a ones column appended; t_aug: (K+1, N) with the
    bias row appended.  Returns (B, N) in `out_dtype`."""
    B, K1 = z_aug.shape
    K1b, N = t_aug.shape
    assert K1 == K1b

    if B <= tm:
        # Native case (the module uses B == 1): one whole-array block, no grid.
        # Total VMEM footprint (~0.3 MiB bf16 T + output) is tiny, so tiling
        # would only add per-step pipeline overhead.
        return pl.pallas_call(
            _fused_kernel,
            out_shape=jax.ShapeDtypeStruct((B, N), out_dtype),
            in_specs=[_full_spec((B, K1)), _full_spec((K1, N))],
            out_specs=_full_spec((B, N)),
        )(z_aug, t_aug)

    # Large batch of z vectors: tile only the batch axis.  No input padding /
    # output slicing: the last (partial) block's out-of-bounds rows are dropped
    # by the pipeline.  Footprint at tm=1024: 2 x (1024x2304 f32 out)
    # + 2 x (1024x65 bf16 z) + 2 x (65x2304 bf16 T) ~= 20 MiB, hence the
    # explicit vmem limit below (v5e's default scoped limit is only 16 MiB;
    # 32 MiB still leaves headroom under v7x's 64 MiB physical VMEM per TC).
    # For very large B feeding a bf16 consumer, pass out_dtype=jnp.bfloat16 to
    # halve the per-step output writeback (N stays lane-dense).
    return pl.pallas_call(
        _fused_kernel,
        out_shape=jax.ShapeDtypeStruct((B, N), out_dtype),
        grid=(pl.cdiv(B, tm),),
        in_specs=[
            pl.BlockSpec((tm, K1), lambda i: (i, 0)),
            # T is grid-invariant (constant index_map) -> fetched once.
            pl.BlockSpec((K1, N), lambda i: (0, 0)),
        ],
        out_specs=pl.BlockSpec((tm, N), lambda i: (i, 0)),
        compiler_params=pltpu.CompilerParams(
            dimension_semantics=("parallel",),   # megacore sharding on v7x
            vmem_limit_bytes=32 << 20,
        ),
    )(z_aug, t_aug)


class HyperNetworkPallas:
    """JAX/Pallas port of the PyTorch HyperNetwork module (fused forward)."""

    def __init__(self, key, f_size=3, z_dim=64, out_size=16, in_size=16,
                 weight_dtype=jnp.bfloat16):
        self.f_size = f_size
        self.z_dim = z_dim
        self.out_size = out_size
        self.in_size = in_size
        self.weight_dtype = weight_dtype
        n_out = out_size * f_size * f_size

        k1, k2, k3, k4 = jax.random.split(key, 4)
        # Deterministic in-script init mirroring torch.fmod(torch.randn(...), 2).
        self.w1 = jnp.fmod(jax.random.normal(k1, (z_dim, n_out), jnp.float32), 2.0)
        self.b1 = jnp.fmod(jax.random.normal(k2, (n_out,), jnp.float32), 2.0)
        self.w2 = jnp.fmod(
            jax.random.normal(k3, (z_dim, in_size * z_dim), jnp.float32), 2.0
        )
        self.b2 = jnp.fmod(
            jax.random.normal(k4, (in_size * z_dim,), jnp.float32), 2.0
        )

        # One-time algebraic collapse of the two linears (valid because there is
        # no nonlinearity between them), done in f32 HIGHEST precision.
        hi = jax.lax.Precision.HIGHEST
        t = jnp.einsum(
            "kid,dn->kin",
            self.w2.reshape(z_dim, in_size, z_dim),
            self.w1,
            precision=hi,
        )                                                    # (z_dim, in, n_out)
        c = (
            jnp.dot(self.b2.reshape(in_size, z_dim), self.w1, precision=hi)
            + self.b1[None, :]
        )                                                    # (in, n_out)
        t2d = t.reshape(z_dim, in_size * n_out)              # (64, 2304) lane-dense
        c_row = c.reshape(1, in_size * n_out)                # (1, 2304)
        # Fold the bias into the matmul (extra contraction row, paired with a
        # constant-1 column on z) and store in bf16: half the DMA bytes and a
        # single MXU pass; accumulation stays f32 inside the kernel.
        self.t_aug = jnp.concatenate([t2d, c_row], axis=0).astype(weight_dtype)

    def __call__(self, z, *, tm=1024, out_dtype=jnp.float32):
        # z: (z_dim,) or (1, z_dim) -> (out, in, f, f)     [module semantics]
        #    (B, z_dim), B > 1      -> (B, out, in, f, f)  [batched extension]
        z2d = jnp.atleast_2d(jnp.asarray(z, jnp.float32))
        B = z2d.shape[0]
        z_aug = jnp.concatenate(
            [z2d, jnp.ones((B, 1), z2d.dtype)], axis=1
        ).astype(self.weight_dtype)                          # (B, z_dim + 1)
        flat = hyper_forward_flat(z_aug, self.t_aug, tm=tm, out_dtype=out_dtype)
        ker = flat.reshape(
            -1, self.out_size, self.in_size, self.f_size, self.f_size
        )
        return ker[0] if B == 1 else ker


if __name__ == "__main__":
    key = jax.random.PRNGKey(0)
    kz, kzb, kp = jax.random.split(key, 3)

    net = HyperNetworkPallas(kp, f_size=3, z_dim=64, out_size=16, in_size=16)

    # Pure-JAX reference: the ORIGINAL (unfused) two-matmul formulation in f32.
    hi = jax.lax.Precision.HIGHEST

    def reference(z_row):
        h_in = (jnp.dot(z_row, net.w2, precision=hi) + net.b2).reshape(
            net.in_size, net.z_dim
        )
        h_final = jnp.dot(h_in, net.w1, precision=hi) + net.b1
        return h_final.reshape(net.out_size, net.in_size, net.f_size, net.f_size)

    def check(out, ref):
        # bf16 operands + f32 accumulation give ~1e-3-level error relative to
        # the output scale (|out| ~ 64); the algebraic collapse reassociation
        # adds ~1e-5 on top.  Use a scale-aware bound.
        err = float(jnp.max(jnp.abs(out - ref)))
        scale = float(jnp.max(jnp.abs(ref)))
        assert err <= 1e-2 * scale + 1e-2, (err, scale)

    # Native module case: a single z vector -> (16, 16, 3, 3) kernel.
    z = jax.random.normal(kz, (1, net.z_dim), jnp.float32)
    out = jax.block_until_ready(net(z))
    assert out.shape == (16, 16, 3, 3), out.shape
    assert out.dtype == jnp.float32
    check(out, reference(z))

    # Batched extension, forced through the gridded path with a partial last
    # block (B=20, tm=8 -> 3 grid steps, 4 out-of-bounds rows dropped, no
    # pad / slice round trip).
    zb = jax.random.normal(kzb, (20, net.z_dim), jnp.float32)
    outb = jax.block_until_ready(net(zb, tm=8))
    assert outb.shape == (20, 16, 16, 3, 3), outb.shape
    refb = jnp.stack([reference(zb[i:i + 1]) for i in range(20)])
    check(outb, refb)

    print("KERNEL_OK")
</pallas_src>

<mosaic_0001>
module attributes {stable_mosaic.version = 11 : i64} {
  func.func @_fused_kernel(%arg0: memref<1x65xbf16, #tpu.memory_space<vmem>>, %arg1: memref<65x2304xbf16, #tpu.memory_space<vmem>>, %arg2: memref<1x2304xf32, #tpu.memory_space<vmem>>) attributes {dimension_semantics = [], scalar_prefetch = 0 : i64, scratch_operands = 0 : i64, tpu.core_type = #tpu.core_type<tc>} {
    %c0 = arith.constant 0 : index
    %c0_0 = arith.constant 0 : index
    %0 = vector.load %arg0[%c0, %c0_0] : memref<1x65xbf16, #tpu.memory_space<vmem>>, vector<1x65xbf16>
    %c0_1 = arith.constant 0 : index
    %c0_2 = arith.constant 0 : index
    %1 = vector.load %arg1[%c0_1, %c0_2] : memref<65x2304xbf16, #tpu.memory_space<vmem>>, vector<65x2304xbf16>
    %cst = arith.constant dense<0.000000e+00> : vector<1x2304xf32>
    %2 = tpu.matmul %0, %1, %cst {dimension_numbers = #tpu.dot_dimension_numbers<[1], [0], [0], [1], [0, 0, 1, 1], [], []>} : vector<1x65xbf16>, vector<65x2304xbf16>, vector<1x2304xf32> -> vector<1x2304xf32>
    %c0_3 = arith.constant 0 : index
    %c0_4 = arith.constant 0 : index
    %3 = vector.load %arg2[%c0_3, %c0_4] : memref<1x2304xf32, #tpu.memory_space<vmem>>, vector<1x2304xf32>
    tpu.vector_store %arg2[%c0_3, %c0_4], %2 {strides = array<i32>} : memref<1x2304xf32, #tpu.memory_space<vmem>>, vector<1x2304xf32>,
    return
  }
}

</mosaic_0001>

<llo_original>
// kernel: tpu_custom_call.1
$region0: #{tpu_custom_call.1}
  #allocation0 [shape = 'u32[]', space=smem, size = 0x4, offset = 0x4, fixed_abs, tag = 'smem constant byte address 0x4 - core index']
  #allocation1 [shape = 'u32[72,128]{1,0:T(1,128)}', space=vmem, size = 0x9000, scoped, tag = 'internal scratch']
  %s0 = inlined_call_operand.hbm [shape: bf16[1,65], index: 0, kind: input, shape index: {}]
  %s1 = inlined_call_operand.hbm [shape: bf16[65,2304], index: 1, kind: input, shape index: {}]
  %s2 = inlined_call_operand.hbm [shape: f32[1,2304], index: 2, kind: output, shape index: {}]
  %s3 = sld [smem:[#allocation0]]
  $region26: #{tpu_custom_call.1} parent=0
    _
  %s5 = ssub.s32 1, %s3
  %s6 = scalar_select 0, %s5, %s3
  $region1: #{tpu_custom_call.1} parent=0
    #allocation2 [shape = 'u8[512]{0}', space=vmem, size = 0x400, scoped, tag = 'input window, operand 0, single buffered']
    #allocation3 [shape = 's32[1]{0}', space=sflag, size = 0x4, scoped, tag = 'scoped memory for tpu_custom_call.1']
    #allocation4 [shape = 's32[1]{0}', space=sflag, size = 0x4, scoped, tag = 'scoped memory for tpu_custom_call.1']
    #allocation5 [shape = 'u8[331776]{0}', space=vmem, size = 0x51000, scoped, tag = 'input window, operand 1, single buffered']
    #allocation6 [shape = 's32[1]{0}', space=sflag, size = 0x4, scoped, tag = 'scoped memory for tpu_custom_call.1']
    #allocation7 [shape = 'u8[9216]{0}', space=vmem, size = 0x2400, scoped, tag = 'output window, operand 0, single buffered']
    %7 = vsyncpa [#allocation3], 0
    %8 = vsyncpa [#allocation6], 0
    %9 = vsyncpa [#allocation4], 0
    // Predicated region
    $region2: #{tpu_custom_call.1} parent=1 // pred_check
      _
    $region3: #{tpu_custom_call.1} parent=1 // pred_check_branch
      %11 = sbr.rel (0) target = $region5
    $region4: #{tpu_custom_call.1} parent=1 // pred_region
      %13 = vsyncadd [#allocation3], 0
      %s15 = sshll.u32 %s0, 4
      %s16 = int_to_ptr.hbm [resolvable:$true] %s15
      %s17 = sshll.u32 [#allocation2], 4
      %s18 = int_to_ptr.vmem [resolvable:$true] %s17
      %20 = dma.hbm_to_vmem [thread:$0]  %s16, 16, %s18, [#allocation3]
    $region5: #{tpu_custom_call.1} parent=1 // pred_fallthru
      _
    // Predicated region
    $region6: #{tpu_custom_call.1} parent=1 // pred_check
      _
    $region7: #{tpu_custom_call.1} parent=1 // pred_check_branch
      %22 = sbr.rel (0) target = $region9
    $region8: #{tpu_custom_call.1} parent=1 // pred_region
      %24 = vsyncadd [#allocation6], 0
      %s25 = sshll.u32 %s1, 4
      %s26 = int_to_ptr.hbm [resolvable:$true] %s25
      %s27 = sshll.u32 [#allocation5], 4
      %s28 = int_to_ptr.vmem [resolvable:$true] %s27
      %33 = dma.hbm_to_vmem [thread:$0]  %s26, 10368, %s28, [#allocation6], 1152, 1152, 72
    $region9: #{tpu_custom_call.1} parent=1 // pred_fallthru
      _
    // Predicated region
    $region10: #{tpu_custom_call.1} parent=1 // pred_check
      _
    $region11: #{tpu_custom_call.1} parent=1 // pred_check_branch
      %35 = sbr.rel (0) target = $region13
    $region12: #{tpu_custom_call.1} parent=1 // pred_region
      %37 = dma.done [#allocation3], 16
    $region13: #{tpu_custom_call.1} parent=1 // pred_fallthru
      _
    // Predicated region
    $region14: #{tpu_custom_call.1} parent=1 // pred_check
      _
    $region15: #{tpu_custom_call.1} parent=1 // pred_check_branch
      %39 = sbr.rel (0) target = $region17
    $region16: #{tpu_custom_call.1} parent=1 // pred_region
      %41 = dma.done [#allocation6], 10368
    $region17: #{tpu_custom_call.1} parent=1 // pred_fallthru
      _
    %v43 = vld [vmem:[#allocation2] sm:$0x1]
    %v44 = vld [vmem:[#allocation5] sm:$0xff]
    %v45 = vld [vmem:[#allocation5 + $0x8] sm:$0xff]
    %v46 = vld [vmem:[#allocation5 + $0x10] sm:$0xff]
    %v47 = vld [vmem:[#allocation5 + $0x18] sm:$0xff]
    %v48 = vld [vmem:[#allocation5 + $0x20] sm:$0xff]
    %v49 = vld [vmem:[#allocation5 + $0x28] sm:$0xff]
    %v50 = vld [vmem:[#allocation5 + $0x30] sm:$0xff]
    %v51 = vld [vmem:[#allocation5 + $0x38] sm:$0xff]
    %v52 = vld [vmem:[#allocation5 + $0x40] sm:$0xff]
    %v53 = vld [vmem:[#allocation5 + $0x48] sm:$0xff]
    %v54 = vld [vmem:[#allocation5 + $0x50] sm:$0xff]
    %v55 = vld [vmem:[#allocation5 + $0x58] sm:$0xff]
    %v56 = vld [vmem:[#allocation5 + $0x60] sm:$0xff]
    %v57 = vld [vmem:[#allocation5 + $0x68] sm:$0xff]
    %v58 = vld [vmem:[#allocation5 + $0x70] sm:$0xff]
    %v59 = vld [vmem:[#allocation5 + $0x78] sm:$0xff]
    %v60 = vld [vmem:[#allocation5 + $0x80] sm:$0xff]
    %v61 = vld [vmem:[#allocation5 + $0x88] sm:$0xff]
    %v62 = vld [vmem:[#allocation5 + $0x90] sm:$0xff]
    %v63 = vld [vmem:[#allocation5 + $0x98] sm:$0xff]
    %v64 = vld [vmem:[#allocation5 + $0xa0] sm:$0xff]
    %v65 = vld [vmem:[#allocation5 + $0xa8] sm:$0xff]
    %v66 = vld [vmem:[#allocation5 + $0xb0] sm:$0xff]
    %v67 = vld [vmem:[#allocation5 + $0xb8] sm:$0xff]
    %v68 = vld [vmem:[#allocation5 + $0xc0] sm:$0xff]
    %v69 = vld [vmem:[#allocation5 + $0xc8] sm:$0xff]
    %v70 = vld [vmem:[#allocation5 + $0xd0] sm:$0xff]
    %v71 = vld [vmem:[#allocation5 + $0xd8] sm:$0xff]
    %v72 = vld [vmem:[#allocation5 + $0xe0] sm:$0xff]
    %v73 = vld [vmem:[#allocation5 + $0xe8] sm:$0xff]
    %v74 = vld [vmem:[#allocation5 + $0xf0] sm:$0xff]
    %v75 = vld [vmem:[#allocation5 + $0xf8] sm:$0xff]
    %v76 = vld [vmem:[#allocation5 + $0x100] sm:$0xff]
    %v77 = vld [vmem:[#allocation5 + $0x108] sm:$0xff]
    %v78 = vld [vmem:[#allocation5 + $0x110] sm:$0xff]
    %v79 = vld [vmem:[#allocation5 + $0x118] sm:$0xff]
    %v80 = vld [vmem:[#allocation5 + $0x120] sm:$0xff]
    %v81 = vld [vmem:[#allocation5 + $0x128] sm:$0xff]
    %v82 = vld [vmem:[#allocation5 + $0x130] sm:$0xff]
    %v83 = vld [vmem:[#allocation5 + $0x138] sm:$0xff]
    %v84 = vld [vmem:[#allocation5 + $0x140] sm:$0xff]
    %v85 = vld [vmem:[#allocation5 + $0x148] sm:$0xff]
    %v86 = vld [vmem:[#allocation5 + $0x150] sm:$0xff]
    %v87 = vld [vmem:[#allocation5 + $0x158] sm:$0xff]
    %v88 = vld [vmem:[#allocation5 + $0x160] sm:$0xff]
    %v89 = vld [vmem:[#allocation5 + $0x168] sm:$0xff]
    %v90 = vld [vmem:[#allocation5 + $0x170] sm:$0xff]
    %v91 = vld [vmem:[#allocation5 + $0x178] sm:$0xff]
    %v92 = vld [vmem:[#allocation5 + $0x180] sm:$0xff]
    %v93 = vld [vmem:[#allocation5 + $0x188] sm:$0xff]
    %v94 = vld [vmem:[#allocation5 + $0x190] sm:$0xff]
    %v95 = vld [vmem:[#allocation5 + $0x198] sm:$0xff]
    %v96 = vld [vmem:[#allocation5 + $0x1a0] sm:$0xff]
    %v97 = vld [vmem:[#allocation5 + $0x1a8] sm:$0xff]
    %v98 = vld [vmem:[#allocation5 + $0x1b0] sm:$0xff]
    %v99 = vld [vmem:[#allocation5 + $0x1b8] sm:$0xff]
    %v100 = vld [vmem:[#allocation5 + $0x1c0] sm:$0xff]
    %v101 = vld [vmem:[#allocation5 + $0x1c8] sm:$0xff]
    %v102 = vld [vmem:[#allocation5 + $0x1d0] sm:$0xff]
    %v103 = vld [vmem:[#allocation5 + $0x1d8] sm:$0xff]
    %v104 = vld [vmem:[#allocation5 + $0x1e0] sm:$0xff]
    %v105 = vld [vmem:[#allocation5 + $0x1e8] sm:$0xff]
    %v106 = vld [vmem:[#allocation5 + $0x1f0] sm:$0xff]
    %v107 = vld [vmem:[#allocation5 + $0x1f8] sm:$0xff]
    %v108 = vld [vmem:[#allocation5 + $0x200] sm:$0xff]
    %v109 = vld [vmem:[#allocation5 + $0x208] sm:$0xff]
    %v110 = vld [vmem:[#allocation5 + $0x210] sm:$0xff]
    %v111 = vld [vmem:[#allocation5 + $0x218] sm:$0xff]
    %v112 = vld [vmem:[#allocation5 + $0x220] sm:$0xff]
    %v113 = vld [vmem:[#allocation5 + $0x228] sm:$0xff]
    %v114 = vld [vmem:[#allocation5 + $0x230] sm:$0xff]
    %v115 = vld [vmem:[#allocation5 + $0x238] sm:$0xff]
    %v116 = vld [vmem:[#allocation5 + $0x240] sm:$0x11]
    %v117 = vld [vmem:[#allocation5 + $0x248] sm:$0x11]
    %v118 = vld [vmem:[#allocation5 + $0x250] sm:$0x11]
    %v119 = vld [vmem:[#allocation5 + $0x258] sm:$0x11]
    %v120 = vld [vmem:[#allocation5 + $0x260] sm:$0x11]
    %v121 = vld [vmem:[#allocation5 + $0x268] sm:$0x11]
    %v122 = vld [vmem:[#allocation5 + $0x270] sm:$0x11]
    %v123 = vld [vmem:[#allocation5 + $0x278] sm:$0x11]
    %v124 = vld [vmem:[#allocation5 + $0x280] sm:$0x11]
    %v206 = vunpack.c.l.b16 %v44
    %v207 = vunpack.c.h.b16 %v44
    %v208 = vunpack.c.l.b16 %v45
    %v209 = vunpack.c.h.b16 %v45
    %v210 = vunpack.c.l.b16 %v46
    %v211 = vunpack.c.h.b16 %v46
    %v212 = vunpack.c.l.b16 %v47
    %v213 = vunpack.c.h.b16 %v47
    %v214 = vunpack.c.l.b16 %v48
    %v215 = vunpack.c.h.b16 %v48
    %v216 = vunpack.c.l.b16 %v49
    %v217 = vunpack.c.h.b16 %v49
    %v218 = vunpack.c.l.b16 %v50
    %v219 = vunpack.c.h.b16 %v50
    %v220 = vunpack.c.l.b16 %v51
    %v221 = vunpack.c.h.b16 %v51
    %v222 = vunpack.c.l.b16 %v52
    %v223 = vunpack.c.h.b16 %v52
    %v224 = vunpack.c.l.b16 %v53
    %v225 = vunpack.c.h.b16 %v53
    %v226 = vunpack.c.l.b16 %v54
    %v227 = vunpack.c.h.b16 %v54
    %v228 = vunpack.c.l.b16 %v55
    %v229 = vunpack.c.h.b16 %v55
    %v230 = vunpack.c.l.b16 %v56
    %v231 = vunpack.c.h.b16 %v56
    %v232 = vunpack.c.l.b16 %v57
    %v233 = vunpack.c.h.b16 %v57
    %v234 = vunpack.c.l.b16 %v58
    %v235 = vunpack.c.h.b16 %v58
    %v236 = vunpack.c.l.b16 %v59
    %v237 = vunpack.c.h.b16 %v59
    %v238 = vunpack.c.l.b16 %v60
    %v239 = vunpack.c.h.b16 %v60
    %v240 = vunpack.c.l.b16 %v61
    %v241 = vunpack.c.h.b16 %v61
    %v242 = vunpack.c.l.b16 %v62
    %v243 = vunpack.c.h.b16 %v62
    %v244 = vunpack.c.l.b16 %v63
    %v245 = vunpack.c.h.b16 %v63
    %v246 = vunpack.c.l.b16 %v64
    %v247 = vunpack.c.h.b16 %v64
    %v248 = vunpack.c.l.b16 %v65
    %v249 = vunpack.c.h.b16 %v65
    %v250 = vunpack.c.l.b16 %v66
    %v251 = vunpack.c.h.b16 %v66
    %v252 = vunpack.c.l.b16 %v67
    %v253 = vunpack.c.h.b16 %v67
    %v254 = vunpack.c.l.b16 %v68
    %v255 = vunpack.c.h.b16 %v68
    %v256 = vunpack.c.l.b16 %v69
    %v257 = vunpack.c.h.b16 %v69
    %v258 = vunpack.c.l.b16 %v70
    %v259 = vunpack.c.h.b16 %v70
    %v260 = vunpack.c.l.b16 %v71
    %v261 = vunpack.c.h.b16 %v71
    %v262 = vunpack.c.l.b16 %v72
    %v263 = vunpack.c.h.b16 %v72
    %v264 = vunpack.c.l.b16 %v73
    %v265 = vunpack.c.h.b16 %v73
    %v266 = vunpack.c.l.b16 %v74
    %v267 = vunpack.c.h.b16 %v74
    %v268 = vunpack.c.l.b16 %v75
    %v269 = vunpack.c.h.b16 %v75
    %v270 = vunpack.c.l.b16 %v76
    %v271 = vunpack.c.h.b16 %v76
    %v272 = vunpack.c.l.b16 %v77
    %v273 = vunpack.c.h.b16 %v77
    %v274 = vunpack.c.l.b16 %v78
    %v275 = vunpack.c.h.b16 %v78
    %v276 = vunpack.c.l.b16 %v79
    %v277 = vunpack.c.h.b16 %v79
    %v278 = vunpack.c.l.b16 %v80
    %v279 = vunpack.c.h.b16 %v80
    %v280 = vunpack.c.l.b16 %v81
    %v281 = vunpack.c.h.b16 %v81
    %v282 = vunpack.c.l.b16 %v82
    %v283 = vunpack.c.h.b16 %v82
    %v284 = vunpack.c.l.b16 %v83
    %v285 = vunpack.c.h.b16 %v83
    %v286 = vunpack.c.l.b16 %v84
    %v287 = vunpack.c.h.b16 %v84
    %v288 = vunpack.c.l.b16 %v85
    %v289 = vunpack.c.h.b16 %v85
    %v290 = vunpack.c.l.b16 %v86
    %v291 = vunpack.c.h.b16 %v86
    %v292 = vunpack.c.l.b16 %v87
    %v293 = vunpack.c.h.b16 %v87
    %v294 = vunpack.c.l.b16 %v88
    %v295 = vunpack.c.h.b16 %v88
    %v296 = vunpack.c.l.b16 %v89
    %v297 = vunpack.c.h.b16 %v89
    %v298 = vunpack.c.l.b16 %v90
    %v299 = vunpack.c.h.b16 %v90
    %v300 = vunpack.c.l.b16 %v91
    %v301 = vunpack.c.h.b16 %v91
    %v302 = vunpack.c.l.b16 %v92
    %v303 = vunpack.c.h.b16 %v92
    %v304 = vunpack.c.l.b16 %v93
    %v305 = vunpack.c.h.b16 %v93
    %v306 = vunpack.c.l.b16 %v94
    %v307 = vunpack.c.h.b16 %v94
    %v308 = vunpack.c.l.b16 %v95
    %v309 = vunpack.c.h.b16 %v95
    %v310 = vunpack.c.l.b16 %v96
    %v311 = vunpack.c.h.b16 %v96
    %v312 = vunpack.c.l.b16 %v97
    %v313 = vunpack.c.h.b16 %v97
    %v314 = vunpack.c.l.b16 %v98
    %v315 = vunpack.c.h.b16 %v98
    %v316 = vunpack.c.l.b16 %v99
    %v317 = vunpack.c.h.b16 %v99
    %v318 = vunpack.c.l.b16 %v100
    %v319 = vunpack.c.h.b16 %v100
    %v320 = vunpack.c.l.b16 %v101
    %v321 = vunpack.c.h.b16 %v101
    %v322 = vunpack.c.l.b16 %v102
    %v323 = vunpack.c.h.b16 %v102
    %v324 = vunpack.c.l.b16 %v103
    %v325 = vunpack.c.h.b16 %v103
    %v326 = vunpack.c.l.b16 %v104
    %v327 = vunpack.c.h.b16 %v104
    %v328 = vunpack.c.l.b16 %v105
    %v329 = vunpack.c.h.b16 %v105
    %v330 = vunpack.c.l.b16 %v106
    %v331 = vunpack.c.h.b16 %v106
    %v332 = vunpack.c.l.b16 %v107
    %v333 = vunpack.c.h.b16 %v107
    %v334 = vunpack.c.l.b16 %v108
    %v335 = vunpack.c.h.b16 %v108
    %v336 = vunpack.c.l.b16 %v109
    %v337 = vunpack.c.h.b16 %v109
    %v338 = vunpack.c.l.b16 %v110
    %v339 = vunpack.c.h.b16 %v110
    %v340 = vunpack.c.l.b16 %v111
    %v341 = vunpack.c.h.b16 %v111
    %v342 = vunpack.c.l.b16 %v112
    %v343 = vunpack.c.h.b16 %v112
    %v344 = vunpack.c.l.b16 %v113
    %v345 = vunpack.c.h.b16 %v113
    %v346 = vunpack.c.l.b16 %v114
    %v347 = vunpack.c.h.b16 %v114
    %v348 = vunpack.c.l.b16 %v115
    %v349 = vunpack.c.h.b16 %v115
    %v350 = vunpack.c.l.b16 %v116
    %v351 = vunpack.c.h.b16 %v116
    %v352 = vunpack.c.l.b16 %v117
    %v353 = vunpack.c.h.b16 %v117
    %v354 = vunpack.c.l.b16 %v118
    %v355 = vunpack.c.h.b16 %v118
    %v356 = vunpack.c.l.b16 %v119
    %v357 = vunpack.c.h.b16 %v119
    %v358 = vunpack.c.l.b16 %v120
    %v359 = vunpack.c.h.b16 %v120
    %v360 = vunpack.c.l.b16 %v121
    %v361 = vunpack.c.h.b16 %v121
    %v362 = vunpack.c.l.b16 %v122
    %v363 = vunpack.c.h.b16 %v122
    %v364 = vunpack.c.l.b16 %v123
    %v365 = vunpack.c.h.b16 %v123
    %v366 = vunpack.c.l.b16 %v124
    %v367 = vunpack.c.h.b16 %v124
    %v368 = vpack.c.b16 %v224, %v206
    %v369 = vpack.c.b16 %v225, %v207
    %v370 = vpack.c.b16 %v226, %v208
    %v371 = vpack.c.b16 %v227, %v209
    %v372 = vpack.c.b16 %v228, %v210
    %v373 = vpack.c.b16 %v229, %v211
    %v374 = vpack.c.b16 %v230, %v212
    %v375 = vpack.c.b16 %v231, %v213
    %v376 = vpack.c.b16 %v232, %v214
    %v377 = vpack.c.b16 %v233, %v215
    %v378 = vpack.c.b16 %v234, %v216
    %v379 = vpack.c.b16 %v235, %v217
    %v380 = vpack.c.b16 %v236, %v218
    %v381 = vpack.c.b16 %v237, %v219
    %v382 = vpack.c.b16 %v238, %v220
    %v383 = vpack.c.b16 %v239, %v221
    %v384 = vpack.c.b16 %v240, %v222
    %v385 = vpack.c.b16 %v241, %v223
    %v386 = vpack.c.b16 %v260, %v242
    %v387 = vpack.c.b16 %v261, %v243
    %v388 = vpack.c.b16 %v262, %v244
    %v389 = vpack.c.b16 %v263, %v245
    %v390 = vpack.c.b16 %v264, %v246
    %v391 = vpack.c.b16 %v265, %v247
    %v392 = vpack.c.b16 %v266, %v248
    %v393 = vpack.c.b16 %v267, %v249
    %v394 = vpack.c.b16 %v268, %v250
    %v395 = vpack.c.b16 %v269, %v251
    %v396 = vpack.c.b16 %v270, %v252
    %v397 = vpack.c.b16 %v271, %v253
    %v398 = vpack.c.b16 %v272, %v254
    %v399 = vpack.c.b16 %v273, %v255
    %v400 = vpack.c.b16 %v274, %v256
    %v401 = vpack.c.b16 %v275, %v257
    %v402 = vpack.c.b16 %v276, %v258
    %v403 = vpack.c.b16 %v277, %v259
    %v404 = vpack.c.b16 %v296, %v278
    %v405 = vpack.c.b16 %v297, %v279
    %v406 = vpack.c.b16 %v298, %v280
    %v407 = vpack.c.b16 %v299, %v281
    %v408 = vpack.c.b16 %v300, %v282
    %v409 = vpack.c.b16 %v301, %v283
    %v410 = vpack.c.b16 %v302, %v284
    %v411 = vpack.c.b16 %v303, %v285
    %v412 = vpack.c.b16 %v304, %v286
    %v413 = vpack.c.b16 %v305, %v287
    %v414 = vpack.c.b16 %v306, %v288
    %v415 = vpack.c.b16 %v307, %v289
    %v416 = vpack.c.b16 %v308, %v290
    %v417 = vpack.c.b16 %v309, %v291
    %v418 = vpack.c.b16 %v310, %v292
    %v419 = vpack.c.b16 %v311, %v293
    %v420 = vpack.c.b16 %v312, %v294
    %v421 = vpack.c.b16 %v313, %v295
    %v422 = vpack.c.b16 %v332, %v314
    %v423 = vpack.c.b16 %v333, %v315
    %v424 = vpack.c.b16 %v334, %v316
    %v425 = vpack.c.b16 %v335, %v317
    %v426 = vpack.c.b16 %v336, %v318
    %v427 = vpack.c.b16 %v337, %v319
    %v428 = vpack.c.b16 %v338, %v320
    %v429 = vpack.c.b16 %v339, %v321
    %v430 = vpack.c.b16 %v340, %v322
    %v431 = vpack.c.b16 %v341, %v323
    %v432 = vpack.c.b16 %v342, %v324
    %v433 = vpack.c.b16 %v343, %v325
    %v434 = vpack.c.b16 %v344, %v326
    %v435 = vpack.c.b16 %v345, %v327
    %v436 = vpack.c.b16 %v346, %v328
    %v437 = vpack.c.b16 %v347, %v329
    %v438 = vpack.c.b16 %v348, %v330
    %v439 = vpack.c.b16 %v349, %v331
    %v440 = vpack.c.b16 %v350, %v350
    %v441 = vpack.c.b16 %v351, %v351
    %v442 = vpack.c.b16 %v352, %v352
    %v443 = vpack.c.b16 %v353, %v353
    %v444 = vpack.c.b16 %v354, %v354
    %v445 = vpack.c.b16 %v355, %v355
    %v446 = vpack.c.b16 %v356, %v356
    %v447 = vpack.c.b16 %v357, %v357
    %v448 = vpack.c.b16 %v358, %v358
    %v449 = vpack.c.b16 %v359, %v359
    %v450 = vpack.c.b16 %v360, %v360
    %v451 = vpack.c.b16 %v361, %v361
    %v452 = vpack.c.b16 %v362, %v362
    %v453 = vpack.c.b16 %v363, %v363
    %v454 = vpack.c.b16 %v364, %v364
    %v455 = vpack.c.b16 %v365, %v365
    %v456 = vpack.c.b16 %v366, %v366
    %v457 = vpack.c.b16 %v367, %v367
    %vm530 = vcmask 531456
    %v532 = vsel %vm530, %v43, 0
    %vm534 = vcmask 1040384
    %v535 = vsel 0, 4294967295, 65535
    %v536 = vsel %vm534, %v535, 0
    %v538 = vand.u32 %v440, %v536
    %v541 = vand.u32 %v441, %v536
    %v544 = vand.u32 %v442, %v536
    %v547 = vand.u32 %v443, %v536
    %v550 = vand.u32 %v444, %v536
    %v553 = vand.u32 %v445, %v536
    %v556 = vand.u32 %v446, %v536
    %v559 = vand.u32 %v447, %v536
    %v562 = vand.u32 %v448, %v536
    %v565 = vand.u32 %v449, %v536
    %v568 = vand.u32 %v450, %v536
    %v571 = vand.u32 %v451, %v536
    %v574 = vand.u32 %v452, %v536
    %v577 = vand.u32 %v453, %v536
    %v580 = vand.u32 %v454, %v536
    %v583 = vand.u32 %v455, %v536
    %v586 = vand.u32 %v456, %v536
    %v589 = vand.u32 %v457, %v536
    %591 = vmatpush.bf16.msra.mxu0 0
    %592 = vmatpush.bf16.msra.mxu0 0
    %593 = vmatpush.bf16.msra.mxu0 0
    %594 = vmatpush.bf16.msra.mxu0 %v538
    %595 = vmatpush.bf16.msra.mxu0 %v422
    %596 = vmatpush.bf16.msra.mxu0 %v404
    %597 = vmatpush.bf16.msra.mxu0 %v386
    %598 = vmatpush.bf16.msra.mxu0 %v368
    %599 = vmatmul.bf16.gmra.mxu0 %v532
    %v600 = vpop.f32.mrf.mxu0
    %v601 = vadd.f32 0.0, %v600
    %v602 = vpop.f32.mrf.mxu0
    %603 = vdwg.mxu0
    %604 = vmatpush.bf16.msra.mxu0 0
    %605 = vmatpush.bf16.msra.mxu0 0
    %606 = vmatpush.bf16.msra.mxu0 0
    %607 = vmatpush.bf16.msra.mxu0 %v541
    %608 = vmatpush.bf16.msra.mxu0 %v423
    %609 = vmatpush.bf16.msra.mxu0 %v405
    %610 = vmatpush.bf16.msra.mxu0 %v387
    %611 = vmatpush.bf16.msra.mxu0 %v369
    %612 = vmatmul.bf16.gmra.mxu0 %v532
    %v613 = vpop.f32.mrf.mxu0
    %v614 = vadd.f32 0.0, %v613
    %v615 = vpop.f32.mrf.mxu0
    %616 = vdwg.mxu0
    %617 = vmatpush.bf16.msra.mxu0 0
    %618 = vmatpush.bf16.msra.mxu0 0
    %619 = vmatpush.bf16.msra.mxu0 0
    %620 = vmatpush.bf16.msra.mxu0 %v544
    %621 = vmatpush.bf16.msra.mxu0 %v424
    %622 = vmatpush.bf16.msra.mxu0 %v406
    %623 = vmatpush.bf16.msra.mxu0 %v388
    %624 = vmatpush.bf16.msra.mxu0 %v370
    %625 = vmatmul.bf16.gmra.mxu0 %v532
    %v626 = vpop.f32.mrf.mxu0
    %v627 = vadd.f32 0.0, %v626
    %v628 = vpop.f32.mrf.mxu0
    %629 = vdwg.mxu0
    %630 = vmatpush.bf16.msra.mxu0 0
    %631 = vmatpush.bf16.msra.mxu0 0
    %632 = vmatpush.bf16.msra.mxu0 0
    %633 = vmatpush.bf16.msra.mxu0 %v547
    %634 = vmatpush.bf16.msra.mxu0 %v425
    %635 = vmatpush.bf16.msra.mxu0 %v407
    %636 = vmatpush.bf16.msra.mxu0 %v389
    %637 = vmatpush.bf16.msra.mxu0 %v371
    %638 = vmatmul.bf16.gmra.mxu0 %v532
    %v639 = vpop.f32.mrf.mxu0
    %v640 = vadd.f32 0.0, %v639
    %v641 = vpop.f32.mrf.mxu0
    %642 = vdwg.mxu0
    %643 = vmatpush.bf16.msra.mxu0 0
    %644 = vmatpush.bf16.msra.mxu0 0
    %645 = vmatpush.bf16.msra.mxu0 0
    %646 = vmatpush.bf16.msra.mxu0 %v550
    %647 = vmatpush.bf16.msra.mxu0 %v426
    %648 = vmatpush.bf16.msra.mxu0 %v408
    %649 = vmatpush.bf16.msra.mxu0 %v390
    %650 = vmatpush.bf16.msra.mxu0 %v372
    %651 = vmatmul.bf16.gmra.mxu0 %v532
    %v652 = vpop.f32.mrf.mxu0
    %v653 = vadd.f32 0.0, %v652
    %v654 = vpop.f32.mrf.mxu0
    %655 = vdwg.mxu0
    %656 = vmatpush.bf16.msra.mxu0 0
    %657 = vmatpush.bf16.msra.mxu0 0
    %658 = vmatpush.bf16.msra.mxu0 0
    %659 = vmatpush.bf16.msra.mxu0 %v553
    %660 = vmatpush.bf16.msra.mxu0 %v427
    %661 = vmatpush.bf16.msra.mxu0 %v409
    %662 = vmatpush.bf16.msra.mxu0 %v391
    %663 = vmatpush.bf16.msra.mxu0 %v373
    %664 = vmatmul.bf16.gmra.mxu0 %v532
    %v665 = vpop.f32.mrf.mxu0
    %v666 = vadd.f32 0.0, %v665
    %v667 = vpop.f32.mrf.mxu0
    %668 = vdwg.mxu0
    %669 = vmatpush.bf16.msra.mxu0 0
    %670 = vmatpush.bf16.msra.mxu0 0
    %671 = vmatpush.bf16.msra.mxu0 0
    %672 = vmatpush.bf16.msra.mxu0 %v556
    %673 = vmatpush.bf16.msra.mxu0 %v428
    %674 = vmatpush.bf16.msra.mxu0 %v410
    %675 = vmatpush.bf16.msra.mxu0 %v392
    %676 = vmatpush.bf16.msra.mxu0 %v374
    %677 = vmatmul.bf16.gmra.mxu0 %v532
    %v678 = vpop.f32.mrf.mxu0
    %v679 = vadd.f32 0.0, %v678
    %v680 = vpop.f32.mrf.mxu0
    %681 = vdwg.mxu0
    %682 = vmatpush.bf16.msra.mxu0 0
    %683 = vmatpush.bf16.msra.mxu0 0
    %684 = vmatpush.bf16.msra.mxu0 0
    %685 = vmatpush.bf16.msra.mxu0 %v559
    %686 = vmatpush.bf16.msra.mxu0 %v429
    %687 = vmatpush.bf16.msra.mxu0 %v411
    %688 = vmatpush.bf16.msra.mxu0 %v393
    %689 = vmatpush.bf16.msra.mxu0 %v375
    %690 = vmatmul.bf16.gmra.mxu0 %v532
    %v691 = vpop.f32.mrf.mxu0
    %v692 = vadd.f32 0.0, %v691
    %v693 = vpop.f32.mrf.mxu0
    %694 = vdwg.mxu0
    %695 = vmatpush.bf16.msra.mxu0 0
    %696 = vmatpush.bf16.msra.mxu0 0
    %697 = vmatpush.bf16.msra.mxu0 0
    %698 = vmatpush.bf16.msra.mxu0 %v562
    %699 = vmatpush.bf16.msra.mxu0 %v430
    %700 = vmatpush.bf16.msra.mxu0 %v412
    %701 = vmatpush.bf16.msra.mxu0 %v394
    %702 = vmatpush.bf16.msra.mxu0 %v376
    %703 = vmatmul.bf16.gmra.mxu0 %v532
    %v704 = vpop.f32.mrf.mxu0
    %v705 = vadd.f32 0.0, %v704
    %v706 = vpop.f32.mrf.mxu0
    %707 = vdwg.mxu0
    %708 = vmatpush.bf16.msra.mxu0 0
    %709 = vmatpush.bf16.msra.mxu0 0
    %710 = vmatpush.bf16.msra.mxu0 0
    %711 = vmatpush.bf16.msra.mxu0 %v565
    %712 = vmatpush.bf16.msra.mxu0 %v431
    %713 = vmatpush.bf16.msra.mxu0 %v413
    %714 = vmatpush.bf16.msra.mxu0 %v395
    %715 = vmatpush.bf16.msra.mxu0 %v377
    %716 = vmatmul.bf16.gmra.mxu0 %v532
    %v717 = vpop.f32.mrf.mxu0
    %v718 = vadd.f32 0.0, %v717
    %v719 = vpop.f32.mrf.mxu0
    %720 = vdwg.mxu0
    %721 = vmatpush.bf16.msra.mxu0 0
    %722 = vmatpush.bf16.msra.mxu0 0
    %723 = vmatpush.bf16.msra.mxu0 0
    %724 = vmatpush.bf16.msra.mxu0 %v568
    %725 = vmatpush.bf16.msra.mxu0 %v432
    %726 = vmatpush.bf16.msra.mxu0 %v414
    %727 = vmatpush.bf16.msra.mxu0 %v396
    %728 = vmatpush.bf16.msra.mxu0 %v378
    %729 = vmatmul.bf16.gmra.mxu0 %v532
    %v730 = vpop.f32.mrf.mxu0
    %v731 = vadd.f32 0.0, %v730
    %v732 = vpop.f32.mrf.mxu0
    %733 = vdwg.mxu0
    %734 = vmatpush.bf16.msra.mxu0 0
    %735 = vmatpush.bf16.msra.mxu0 0
    %736 = vmatpush.bf16.msra.mxu0 0
    %737 = vmatpush.bf16.msra.mxu0 %v571
    %738 = vmatpush.bf16.msra.mxu0 %v433
    %739 = vmatpush.bf16.msra.mxu0 %v415
    %740 = vmatpush.bf16.msra.mxu0 %v397
    %741 = vmatpush.bf16.msra.mxu0 %v379
    %742 = vmatmul.bf16.gmra.mxu0 %v532
    %v743 = vpop.f32.mrf.mxu0
    %v744 = vadd.f32 0.0, %v743
    %v745 = vpop.f32.mrf.mxu0
    %746 = vdwg.mxu0
    %747 = vmatpush.bf16.msra.mxu0 0
    %748 = vmatpush.bf16.msra.mxu0 0
    %749 = vmatpush.bf16.msra.mxu0 0
    %750 = vmatpush.bf16.msra.mxu0 %v574
    %751 = vmatpush.bf16.msra.mxu0 %v434
    %752 = vmatpush.bf16.msra.mxu0 %v416
    %753 = vmatpush.bf16.msra.mxu0 %v398
    %754 = vmatpush.bf16.msra.mxu0 %v380
    %755 = vmatmul.bf16.gmra.mxu0 %v532
    %v756 = vpop.f32.mrf.mxu0
    %v757 = vadd.f32 0.0, %v756
    %v758 = vpop.f32.mrf.mxu0
    %759 = vdwg.mxu0
    %760 = vmatpush.bf16.msra.mxu0 0
    %761 = vmatpush.bf16.msra.mxu0 0
    %762 = vmatpush.bf16.msra.mxu0 0
    %763 = vmatpush.bf16.msra.mxu0 %v577
    %764 = vmatpush.bf16.msra.mxu0 %v435
    %765 = vmatpush.bf16.msra.mxu0 %v417
    %766 = vmatpush.bf16.msra.mxu0 %v399
    %767 = vmatpush.bf16.msra.mxu0 %v381
    %768 = vmatmul.bf16.gmra.mxu0 %v532
    %v769 = vpop.f32.mrf.mxu0
    %v770 = vadd.f32 0.0, %v769
    %v771 = vpop.f32.mrf.mxu0
    %772 = vdwg.mxu0
    %773 = vmatpush.bf16.msra.mxu0 0
    %774 = vmatpush.bf16.msra.mxu0 0
    %775 = vmatpush.bf16.msra.mxu0 0
    %776 = vmatpush.bf16.msra.mxu0 %v580
    %777 = vmatpush.bf16.msra.mxu0 %v436
    %778 = vmatpush.bf16.msra.mxu0 %v418
    %779 = vmatpush.bf16.msra.mxu0 %v400
    %780 = vmatpush.bf16.msra.mxu0 %v382
    %781 = vmatmul.bf16.gmra.mxu0 %v532
    %v782 = vpop.f32.mrf.mxu0
    %v783 = vadd.f32 0.0, %v782
    %v784 = vpop.f32.mrf.mxu0
    %785 = vdwg.mxu0
    %786 = vmatpush.bf16.msra.mxu0 0
    %787 = vmatpush.bf16.msra.mxu0 0
    %788 = vmatpush.bf16.msra.mxu0 0
    %789 = vmatpush.bf16.msra.mxu0 %v583
    %790 = vmatpush.bf16.msra.mxu0 %v437
    %791 = vmatpush.bf16.msra.mxu0 %v419
    %792 = vmatpush.bf16.msra.mxu0 %v401
    %793 = vmatpush.bf16.msra.mxu0 %v383
    %794 = vmatmul.bf16.gmra.mxu0 %v532
    %v795 = vpop.f32.mrf.mxu0
    %v796 = vadd.f32 0.0, %v795
    %v797 = vpop.f32.mrf.mxu0
    %798 = vdwg.mxu0
    %799 = vmatpush.bf16.msra.mxu0 0
    %800 = vmatpush.bf16.msra.mxu0 0
    %801 = vmatpush.bf16.msra.mxu0 0
    %802 = vmatpush.bf16.msra.mxu0 %v586
    %803 = vmatpush.bf16.msra.mxu0 %v438
    %804 = vmatpush.bf16.msra.mxu0 %v420
    %805 = vmatpush.bf16.msra.mxu0 %v402
    %806 = vmatpush.bf16.msra.mxu0 %v384
    %807 = vmatmul.bf16.gmra.mxu0 %v532
    %v808 = vpop.f32.mrf.mxu0
    %v809 = vadd.f32 0.0, %v808
    %v810 = vpop.f32.mrf.mxu0
    %811 = vdwg.mxu0
    %812 = vmatpush.bf16.msra.mxu0 0
    %813 = vmatpush.bf16.msra.mxu0 0
    %814 = vmatpush.bf16.msra.mxu0 0
    %815 = vmatpush.bf16.msra.mxu0 %v589
    %816 = vmatpush.bf16.msra.mxu0 %v439
    %817 = vmatpush.bf16.msra.mxu0 %v421
    %818 = vmatpush.bf16.msra.mxu0 %v403
    %819 = vmatpush.bf16.msra.mxu0 %v385
    %820 = vmatmul.bf16.gmra.mxu0 %v532
    %v821 = vpop.f32.mrf.mxu0
    %v822 = vadd.f32 0.0, %v821
    %v823 = vpop.f32.mrf.mxu0
    %824 = vdwg.mxu0
    %v843 = vrot.slane %v614, 7
    %v844 = vrot.slane %v627, 6
    %v845 = vrot.slane %v640, 5
    %v846 = vrot.slane %v653, 4
    %v847 = vrot.slane %v666, 3
    %v848 = vrot.slane %v679, 2
    %v849 = vrot.slane %v692, 1
    %v850 = vrot.slane %v718, 7
    %v851 = vrot.slane %v731, 6
    %v852 = vrot.slane %v744, 5
    %v853 = vrot.slane %v757, 4
    %v854 = vrot.slane %v770, 3
    %v855 = vrot.slane %v783, 2
    %v856 = vrot.slane %v796, 1
    %v857 = vrot.slane %v822, 7
    %v858 = vsel %vm534, %v601, %v843
    %vm859 = vcmask 1042434
    %v860 = vsel %vm859, %v844, %v845
    %vm861 = vcmask 1041408
    %v862 = vsel %vm861, %v858, %v860
    %vm863 = vcmask 1044484
    %v864 = vsel %vm863, %v846, %v847
    %vm865 = vcmask 1046534
    %v866 = vsel %vm865, %v848, %v849
    %vm867 = vcmask 1045508
    %v868 = vsel %vm867, %v864, %v866
    %vm869 = vcmask 1043456
    %v870 = vsel %vm869, %v862, %v868
    %v871 = vsel %vm534, %v705, %v850
    %v872 = vsel %vm859, %v851, %v852
    %v873 = vsel %vm861, %v871, %v872
    %v874 = vsel %vm863, %v853, %v854
    %v875 = vsel %vm865, %v855, %v856
    %v876 = vsel %vm867, %v874, %v875
    %v877 = vsel %vm869, %v873, %v876
    %v878 = vsel %vm534, %v809, %v857
    %882 = vst [vmem:[#allocation7] sm:$0xff] %v870
    %883 = vst [vmem:[#allocation7 + $0x8] sm:$0xff] %v877
    %v884 = vlaneseq
    %vm885 = vcmp.ge.s32.totalorder %v884, 0
    %vm886 = vcmp.lt.s32.totalorder %v884, 256
    %vm887 = vmand %vm885, %vm886
    %888 = vst.msk [vmem:[#allocation7 + $0x10] sm:$0x3] %vm887, %v878
    // Predicated region
    $region18: #{tpu_custom_call.1} parent=1 // pred_check
      _
    $region19: #{tpu_custom_call.1} parent=1 // pred_check_branch
      %890 = sbr.rel (0) target = $region21
    $region20: #{tpu_custom_call.1} parent=1 // pred_region
      %892 = vsyncadd [#allocation4], 0
      %s894 = sshll.u32 [#allocation7], 4
      %s895 = int_to_ptr.vmem [resolvable:$true] %s894
      %s896 = sshll.u32 %s2, 4
      %s897 = int_to_ptr.hbm [resolvable:$true] %s896
      %899 = dma.vmem_to_hbm [thread:$0]  %s895, 288, %s897, [#allocation4]
    $region21: #{tpu_custom_call.1} parent=1 // pred_fallthru
      _
    // Predicated region
    $region22: #{tpu_custom_call.1} parent=1 // pred_check
      _
    $region23: #{tpu_custom_call.1} parent=1 // pred_check_branch
      %901 = sbr.rel (0) target = $region25
    $region24: #{tpu_custom_call.1} parent=1 // pred_region
      %903 = dma.done [#allocation4], 288
    $region25: #{tpu_custom_call.1} parent=1 // pred_fallthru
      _
    %904 = vsyncpa [#allocation3], 1
    %905 = vsyncpa [#allocation6], 1
    %906 = vsyncpa [#allocation4], 1

</llo_original>
